<compile_context>
chip_gen: v5e
topology: v5e:2x2
jax: 0.10.0
libtpu: 0.0.40
codegen_flags: <defaults>
</compile_context>

<pallas_src>
import functools

import jax
import jax.numpy as jnp
from jax.experimental import pallas as pl
from jax.experimental.pallas import tpu as pltpu

HIDDEN1 = 512
HIDDEN2 = 256
LANE = 128


def _round_up(x, m):
    return ((x + m - 1) // m) * m


def mlp_kernel(x_ref, w1_ref, b1_ref, w2_ref, b2_ref, w3_ref, b3_ref, o_ref):
    # x_ref: (TB, in_dim) bf16 -> all three matmuls + bias + ReLU fused in VMEM.
    # Matmuls run in bf16 on the MXU with f32 accumulation; bias add / ReLU in f32.
    x = x_ref[...]
    h1 = jnp.dot(x, w1_ref[...], preferred_element_type=jnp.float32) + b1_ref[...]
    h1 = jnp.maximum(h1, 0.0)
    # dropout1: identity in eval mode
    h2 = (jnp.dot(h1.astype(jnp.bfloat16), w2_ref[...],
                  preferred_element_type=jnp.float32) + b2_ref[...])
    h2 = jnp.maximum(h2, 0.0)
    # dropout2: identity in eval mode
    out = (jnp.dot(h2.astype(jnp.bfloat16), w3_ref[...],
                   preferred_element_type=jnp.float32) + b3_ref[...])
    o_ref[...] = out.astype(o_ref.dtype)


@functools.partial(jax.jit, static_argnames=("block_b",))
def mlp_forward(x, w1, b1, w2, b2, w3, b3, *, block_b=256):
    B, in_dim = x.shape
    out_dim = w3.shape[1]

    # --- batch tiling: big MXU-filling tiles, tail handled by zero-padding B ---
    block_b = min(block_b, _round_up(B, 8))        # small batches -> single step
    B_pad = _round_up(B, block_b)
    if B_pad != B:
        x = jnp.pad(x, ((0, B_pad - B), (0, 0)))

    # --- lane-dense output: pad out_dim up to a multiple of 128 ---
    out_pad = _round_up(out_dim, LANE)
    if out_pad != out_dim:
        w3 = jnp.pad(w3, ((0, 0), (0, out_pad - out_dim)))
        b3 = jnp.pad(b3, ((0, 0), (0, out_pad - out_dim)))

    # --- bf16 matmul operands (f32 accumulate + f32 bias/ReLU inside kernel) ---
    x_bf = x.astype(jnp.bfloat16)
    w1_bf = w1.astype(jnp.bfloat16)
    w2_bf = w2.astype(jnp.bfloat16)
    w3_bf = w3.astype(jnp.bfloat16)

    grid = (pl.cdiv(B_pad, block_b),)

    flops = 2 * B_pad * (in_dim * HIDDEN1 + HIDDEN1 * HIDDEN2 + HIDDEN2 * out_pad)
    bytes_accessed = (
        x_bf.size * 2
        + (w1_bf.size + w2_bf.size + w3_bf.size) * 2
        + (b1.size + b2.size + b3.size) * 4
        + B_pad * out_pad * 4
    )

    out = pl.pallas_call(
        mlp_kernel,
        out_shape=jax.ShapeDtypeStruct((B_pad, out_pad), jnp.float32),
        grid_spec=pltpu.PrefetchScalarGridSpec(
            num_scalar_prefetch=0,
            grid=grid,
            in_specs=[
                pl.BlockSpec((block_b, in_dim), lambda i: (i, 0)),    # x tile (bf16)
                pl.BlockSpec((in_dim, HIDDEN1), lambda i: (0, 0)),    # W1 (bf16)
                pl.BlockSpec((1, HIDDEN1), lambda i: (0, 0)),         # b1 (f32)
                pl.BlockSpec((HIDDEN1, HIDDEN2), lambda i: (0, 0)),   # W2 (bf16)
                pl.BlockSpec((1, HIDDEN2), lambda i: (0, 0)),         # b2 (f32)
                pl.BlockSpec((HIDDEN2, out_pad), lambda i: (0, 0)),   # W3 (bf16, lane-padded)
                pl.BlockSpec((1, out_pad), lambda i: (0, 0)),         # b3 (f32, lane-padded)
            ],
            out_specs=pl.BlockSpec((block_b, out_pad), lambda i: (i, 0)),
        ),
        compiler_params=pltpu.CompilerParams(
            dimension_semantics=("parallel",),
        ),
        cost_estimate=pl.CostEstimate(
            flops=flops, transcendentals=0, bytes_accessed=bytes_accessed
        ),
    )(x_bf, w1_bf, b1, w2_bf, b2, w3_bf, b3)

    return out[:B, :out_dim]


def init_linear(key, fan_in, fan_out):
    # Deterministic init mimicking nn.Linear's uniform(-1/sqrt(fan_in), 1/sqrt(fan_in)).
    kw, kb = jax.random.split(key)
    bound = 1.0 / jnp.sqrt(jnp.asarray(fan_in, jnp.float32))
    # stored as [in, out] (transpose of PyTorch's [out, in])
    w = jax.random.uniform(kw, (fan_in, fan_out), jnp.float32, -bound, bound)
    b = jax.random.uniform(kb, (1, fan_out), jnp.float32, -bound, bound)
    return w, b


def mlp_reference(x, w1, b1, w2, b2, w3, b3):
    # Mirrors the kernel's numerics: bf16 matmul operands, f32 accumulate/bias/ReLU.
    h1 = jnp.dot(x.astype(jnp.bfloat16), w1.astype(jnp.bfloat16),
                 preferred_element_type=jnp.float32) + b1
    h1 = jnp.maximum(h1, 0.0)
    h2 = jnp.dot(h1.astype(jnp.bfloat16), w2.astype(jnp.bfloat16),
                 preferred_element_type=jnp.float32) + b2
    h2 = jnp.maximum(h2, 0.0)
    return jnp.dot(h2.astype(jnp.bfloat16), w3.astype(jnp.bfloat16),
                   preferred_element_type=jnp.float32) + b3


if __name__ == "__main__":
    in_dim, out_dim = 32, 8
    batch = 16

    key = jax.random.PRNGKey(0)
    kx, k1, k2, k3 = jax.random.split(key, 4)

    x = jax.random.normal(kx, (batch, in_dim), jnp.float32)
    w1, b1 = init_linear(k1, in_dim, HIDDEN1)
    w2, b2 = init_linear(k2, HIDDEN1, HIDDEN2)
    w3, b3 = init_linear(k3, HIDDEN2, out_dim)

    out = mlp_forward(x, w1, b1, w2, b2, w3, b3)
    out = jax.block_until_ready(out)

    ref = mlp_reference(x, w1, b1, w2, b2, w3, b3)
    assert out.shape == (batch, out_dim)
    assert jnp.allclose(out, ref, atol=2e-2, rtol=2e-2), float(
        jnp.max(jnp.abs(out - ref))
    )

    print("KERNEL_OK")
</pallas_src>

<mosaic_0001>
module attributes {stable_mosaic.version = 11 : i64} {
  func.func @mlp_kernel(%arg0: i32, %arg1: memref<16x32xbf16, #tpu.memory_space<vmem>>, %arg2: memref<32x512xbf16, #tpu.memory_space<vmem>>, %arg3: memref<1x512xf32, #tpu.memory_space<vmem>>, %arg4: memref<512x256xbf16, #tpu.memory_space<vmem>>, %arg5: memref<1x256xf32, #tpu.memory_space<vmem>>, %arg6: memref<256x128xbf16, #tpu.memory_space<vmem>>, %arg7: memref<1x128xf32, #tpu.memory_space<vmem>>, %arg8: memref<16x128xf32, #tpu.memory_space<vmem>>) attributes {dimension_semantics = [#tpu.dimension_semantics<parallel>], iteration_bounds = array<i64: 1>, scalar_prefetch = 0 : i64, scratch_operands = 0 : i64, tpu.core_type = #tpu.core_type<tc>, window_params = [{transform_indices = @transform_0, window_bounds = array<i64: 16, 32>}, {pipeline_mode = #tpu.pipeline_mode<synchronous>, transform_indices = @transform_1, window_bounds = array<i64: 32, 512>}, {pipeline_mode = #tpu.pipeline_mode<synchronous>, transform_indices = @transform_2, window_bounds = array<i64: 1, 512>}, {pipeline_mode = #tpu.pipeline_mode<synchronous>, transform_indices = @transform_3, window_bounds = array<i64: 512, 256>}, {pipeline_mode = #tpu.pipeline_mode<synchronous>, transform_indices = @transform_4, window_bounds = array<i64: 1, 256>}, {pipeline_mode = #tpu.pipeline_mode<synchronous>, transform_indices = @transform_5, window_bounds = array<i64: 256, 128>}, {pipeline_mode = #tpu.pipeline_mode<synchronous>, transform_indices = @transform_6, window_bounds = array<i64: 1, 128>}, {transform_indices = @transform_7, window_bounds = array<i64: 16, 128>}]} {
    %c0 = arith.constant 0 : index
    %c0_0 = arith.constant 0 : index
    %0 = vector.load %arg1[%c0, %c0_0] : memref<16x32xbf16, #tpu.memory_space<vmem>>, vector<16x32xbf16>
    %c0_1 = arith.constant 0 : index
    %c0_2 = arith.constant 0 : index
    %1 = vector.load %arg2[%c0_1, %c0_2] : memref<32x512xbf16, #tpu.memory_space<vmem>>, vector<32x512xbf16>
    %cst = arith.constant dense<0.000000e+00> : vector<16x512xf32>
    %2 = tpu.matmul %0, %1, %cst {dimension_numbers = #tpu.dot_dimension_numbers<[1], [0], [0], [1], [0, 0, 1, 1], [], []>} : vector<16x32xbf16>, vector<32x512xbf16>, vector<16x512xf32> -> vector<16x512xf32>
    %c0_3 = arith.constant 0 : index
    %c0_4 = arith.constant 0 : index
    %3 = vector.load %arg3[%c0_3, %c0_4] : memref<1x512xf32, #tpu.memory_space<vmem>>, vector<1x512xf32>
    %4 = vector.broadcast %3 : vector<1x512xf32> to vector<16x512xf32>
    %5 = arith.addf %2, %4 : vector<16x512xf32>
    %cst_5 = arith.constant 0.000000e+00 : f32
    %6 = vector.broadcast %cst_5 : f32 to vector<16x512xf32>
    %7 = arith.maximumf %5, %6 : vector<16x512xf32>
    %8 = arith.truncf %7 : vector<16x512xf32> to vector<16x512xbf16>
    %c0_6 = arith.constant 0 : index
    %c0_7 = arith.constant 0 : index
    %9 = vector.load %arg4[%c0_6, %c0_7] : memref<512x256xbf16, #tpu.memory_space<vmem>>, vector<512x256xbf16>
    %cst_8 = arith.constant dense<0.000000e+00> : vector<16x256xf32>
    %10 = tpu.matmul %8, %9, %cst_8 {dimension_numbers = #tpu.dot_dimension_numbers<[1], [0], [0], [1], [0, 0, 1, 1], [], []>} : vector<16x512xbf16>, vector<512x256xbf16>, vector<16x256xf32> -> vector<16x256xf32>
    %c0_9 = arith.constant 0 : index
    %c0_10 = arith.constant 0 : index
    %11 = vector.load %arg5[%c0_9, %c0_10] : memref<1x256xf32, #tpu.memory_space<vmem>>, vector<1x256xf32>
    %12 = vector.broadcast %11 : vector<1x256xf32> to vector<16x256xf32>
    %13 = arith.addf %10, %12 : vector<16x256xf32>
    %cst_11 = arith.constant 0.000000e+00 : f32
    %14 = vector.broadcast %cst_11 : f32 to vector<16x256xf32>
    %15 = arith.maximumf %13, %14 : vector<16x256xf32>
    %16 = arith.truncf %15 : vector<16x256xf32> to vector<16x256xbf16>
    %c0_12 = arith.constant 0 : index
    %c0_13 = arith.constant 0 : index
    %17 = vector.load %arg6[%c0_12, %c0_13] : memref<256x128xbf16, #tpu.memory_space<vmem>>, vector<256x128xbf16>
    %cst_14 = arith.constant dense<0.000000e+00> : vector<16x128xf32>
    %18 = tpu.matmul %16, %17, %cst_14 {dimension_numbers = #tpu.dot_dimension_numbers<[1], [0], [0], [1], [0, 0, 1, 1], [], []>} : vector<16x256xbf16>, vector<256x128xbf16>, vector<16x128xf32> -> vector<16x128xf32>
    %c0_15 = arith.constant 0 : index
    %c0_16 = arith.constant 0 : index
    %19 = vector.load %arg7[%c0_15, %c0_16] : memref<1x128xf32, #tpu.memory_space<vmem>>, vector<1x128xf32>
    %20 = vector.broadcast %19 : vector<1x128xf32> to vector<16x128xf32>
    %21 = arith.addf %18, %20 : vector<16x128xf32>
    %c0_17 = arith.constant 0 : index
    %c0_18 = arith.constant 0 : index
    %22 = vector.load %arg8[%c0_17, %c0_18] : memref<16x128xf32, #tpu.memory_space<vmem>>, vector<16x128xf32>
    tpu.vector_store %arg8[%c0_17, %c0_18], %21 {strides = array<i32>} : memref<16x128xf32, #tpu.memory_space<vmem>>, vector<16x128xf32>,
    return
  }
  func.func @transform_0(%arg0: i32) -> (i32, i32) {
    %c0_i32 = arith.constant 0 : i32
    %c0_i32_0 = arith.constant 0 : i32
    return %arg0, %c0_i32 : i32, i32
  }
  func.func @transform_1(%arg0: i32) -> (i32, i32) {
    %c0_i32 = arith.constant 0 : i32
    %c0_i32_0 = arith.constant 0 : i32
    %c0_i32_1 = arith.constant 0 : i32
    return %c0_i32, %c0_i32_0 : i32, i32
  }
  func.func @transform_2(%arg0: i32) -> (i32, i32) {
    %c0_i32 = arith.constant 0 : i32
    %c0_i32_0 = arith.constant 0 : i32
    %c0_i32_1 = arith.constant 0 : i32
    return %c0_i32, %c0_i32_0 : i32, i32
  }
  func.func @transform_3(%arg0: i32) -> (i32, i32) {
    %c0_i32 = arith.constant 0 : i32
    %c0_i32_0 = arith.constant 0 : i32
    %c0_i32_1 = arith.constant 0 : i32
    return %c0_i32, %c0_i32_0 : i32, i32
  }
  func.func @transform_4(%arg0: i32) -> (i32, i32) {
    %c0_i32 = arith.constant 0 : i32
    %c0_i32_0 = arith.constant 0 : i32
    %c0_i32_1 = arith.constant 0 : i32
    return %c0_i32, %c0_i32_0 : i32, i32
  }
  func.func @transform_5(%arg0: i32) -> (i32, i32) {
    %c0_i32 = arith.constant 0 : i32
    %c0_i32_0 = arith.constant 0 : i32
    %c0_i32_1 = arith.constant 0 : i32
    return %c0_i32, %c0_i32_0 : i32, i32
  }
  func.func @transform_6(%arg0: i32) -> (i32, i32) {
    %c0_i32 = arith.constant 0 : i32
    %c0_i32_0 = arith.constant 0 : i32
    %c0_i32_1 = arith.constant 0 : i32
    return %c0_i32, %c0_i32_0 : i32, i32
  }
  func.func @transform_7(%arg0: i32) -> (i32, i32) {
    %c0_i32 = arith.constant 0 : i32
    %c0_i32_0 = arith.constant 0 : i32
    return %arg0, %c0_i32 : i32, i32
  }
}

</mosaic_0001>

<llo_original>
// kernel: mlp_forward.1
$region0: #{mlp_forward.1}
  #allocation0 [shape = 'u32[]', space=smem, size = 0x4, offset = 0x4, fixed_abs, tag = 'smem constant byte address 0x4 - core index']
  #allocation1 [shape = 'u32[72,128]{1,0:T(1,128)}', space=vmem, size = 0x9000, scoped, tag = 'internal scratch']
  %s0 = inlined_call_operand.vmem [shape: bf16[16,32], index: 0, kind: input, shape index: {}]
  %s1 = inlined_call_operand.vmem [shape: bf16[32,512], index: 1, kind: input, shape index: {}]
  %s2 = inlined_call_operand.vmem [shape: f32[1,512], index: 2, kind: input, shape index: {}]
  %s3 = inlined_call_operand.vmem [shape: bf16[512,256], index: 3, kind: input, shape index: {}]
  %s4 = inlined_call_operand.vmem [shape: f32[1,256], index: 4, kind: input, shape index: {}]
  %s5 = inlined_call_operand.vmem [shape: bf16[256,128], index: 5, kind: input, shape index: {}]
  %s6 = inlined_call_operand.vmem [shape: f32[1,128], index: 6, kind: input, shape index: {}]
  %s7 = inlined_call_operand.vmem [shape: f32[16,128], index: 7, kind: output, shape index: {}]
  %s8 = sld [smem:[#allocation0]]
  $region38: #{mlp_forward.1} parent=0
    _
  %s10 = ssub.s32 1, %s8
  %s11 = scalar_select 0, %s10, %s8
  // Predicated region
  $region2: #{mlp_forward.1} parent=0 // pred_check
    _
  $region3: #{mlp_forward.1} parent=0 // pred_check_branch
    %13 = sbr.rel (0) target = $region5
  $region4: #{mlp_forward.1} parent=0 // pred_region
    _
  $region5: #{mlp_forward.1} parent=0 // pred_fallthru
    _
  // Predicated region
  $region6: #{mlp_forward.1} parent=0 // pred_check
    _
  $region7: #{mlp_forward.1} parent=0 // pred_check_branch
    %15 = sbr.rel (0) target = $region9
  $region8: #{mlp_forward.1} parent=0 // pred_region
    _
  $region9: #{mlp_forward.1} parent=0 // pred_fallthru
    _
  // Predicated region
  $region10: #{mlp_forward.1} parent=0 // pred_check
    _
  $region11: #{mlp_forward.1} parent=0 // pred_check_branch
    %17 = sbr.rel (0) target = $region13
  $region12: #{mlp_forward.1} parent=0 // pred_region
    _
  $region13: #{mlp_forward.1} parent=0 // pred_fallthru
    _
  // Predicated region
  $region14: #{mlp_forward.1} parent=0 // pred_check
    _
  $region15: #{mlp_forward.1} parent=0 // pred_check_branch
    %19 = sbr.rel (0) target = $region17
  $region16: #{mlp_forward.1} parent=0 // pred_region
    _
  $region17: #{mlp_forward.1} parent=0 // pred_fallthru
    _
  // Predicated region
  $region18: #{mlp_forward.1} parent=0 // pred_check
    _
  $region19: #{mlp_forward.1} parent=0 // pred_check_branch
    %21 = sbr.rel (0) target = $region21
  $region20: #{mlp_forward.1} parent=0 // pred_region
    _
  $region21: #{mlp_forward.1} parent=0 // pred_fallthru
    _
  // Predicated region
  $region22: #{mlp_forward.1} parent=0 // pred_check
    _
  $region23: #{mlp_forward.1} parent=0 // pred_check_branch
    %23 = sbr.rel (0) target = $region25
  $region24: #{mlp_forward.1} parent=0 // pred_region
    _
  $region25: #{mlp_forward.1} parent=0 // pred_fallthru
    _
  // Predicated region
  $region26: #{mlp_forward.1} parent=0 // pred_check
    _
  $region27: #{mlp_forward.1} parent=0 // pred_check_branch
    %25 = sbr.rel (0) target = $region29
  $region28: #{mlp_forward.1} parent=0 // pred_region
    _
  $region29: #{mlp_forward.1} parent=0 // pred_fallthru
    _
  %v27 = vld [vmem:[%s0] sm:$0xf]
  %v28 = vld [vmem:[%s0 + $0x4] sm:$0xf]
  %v29 = vld [vmem:[%s1] sm:$0xff]
  %v30 = vld [vmem:[%s1 + $0x8] sm:$0xff]
  %v31 = vld [vmem:[%s1 + $0x10] sm:$0xff]
  %v32 = vld [vmem:[%s1 + $0x18] sm:$0xff]
  %v33 = vld [vmem:[%s1 + $0x20] sm:$0xff]
  %v34 = vld [vmem:[%s1 + $0x28] sm:$0xff]
  %v35 = vld [vmem:[%s1 + $0x30] sm:$0xff]
  %v36 = vld [vmem:[%s1 + $0x38] sm:$0xff]
  %v37 = vld [vmem:[%s2] sm:$0xf]
  %v39 = vperm.slane %v37, 0
  %v40 = vperm.slane %v37, 1
  %v41 = vperm.slane %v37, 2
  %v42 = vperm.slane %v37, 3
  %v49 = vunpack.c.l.b16 %v27
  %v50 = vunpack.c.l.b16 %v28
  %v51 = vpack.c.b16 %v50, %v49
  %v60 = vunpack.c.l.b16 %v29
  %v61 = vunpack.c.h.b16 %v29
  %v62 = vunpack.c.l.b16 %v30
  %v63 = vunpack.c.h.b16 %v30
  %v64 = vunpack.c.l.b16 %v31
  %v65 = vunpack.c.h.b16 %v31
  %v66 = vunpack.c.l.b16 %v32
  %v67 = vunpack.c.h.b16 %v32
  %v68 = vunpack.c.l.b16 %v33
  %v69 = vunpack.c.h.b16 %v33
  %v70 = vunpack.c.l.b16 %v34
  %v71 = vunpack.c.h.b16 %v34
  %v72 = vunpack.c.l.b16 %v35
  %v73 = vunpack.c.h.b16 %v35
  %v74 = vunpack.c.l.b16 %v36
  %v75 = vunpack.c.h.b16 %v36
  %v76 = vpack.c.b16 %v64, %v60
  %v77 = vpack.c.b16 %v65, %v61
  %v78 = vpack.c.b16 %v66, %v62
  %v79 = vpack.c.b16 %v67, %v63
  %v80 = vpack.c.b16 %v72, %v68
  %v81 = vpack.c.b16 %v73, %v69
  %v82 = vpack.c.b16 %v74, %v70
  %v83 = vpack.c.b16 %v75, %v71
  %vm92 = vcmask 261120
  %v94 = vsel %vm92, %v51, 0
  %96 = vmatpush.bf16.msra.mxu0 0
  %97 = vmatpush.bf16.msra.mxu0 0
  %98 = vmatpush.bf16.msra.mxu0 0
  %99 = vmatpush.bf16.msra.mxu0 0
  %100 = vmatpush.bf16.msra.mxu0 0
  %101 = vmatpush.bf16.msra.mxu0 0
  %102 = vmatpush.bf16.msra.mxu0 %v80
  %103 = vmatpush.bf16.msra.mxu0 %v76
  %104 = vmatmul.bf16.gmra.mxu0 %v94
  %v105 = vpop.f32.mrf.mxu0
  %v106 = vadd.f32 %v39, %v105
  %v107 = vpop.f32.mrf.mxu0
  %v108 = vadd.f32 %v39, %v107
  %109 = vdwg.mxu0
  %110 = vmatpush.bf16.msra.mxu0 0
  %111 = vmatpush.bf16.msra.mxu0 0
  %112 = vmatpush.bf16.msra.mxu0 0
  %113 = vmatpush.bf16.msra.mxu0 0
  %114 = vmatpush.bf16.msra.mxu0 0
  %115 = vmatpush.bf16.msra.mxu0 0
  %116 = vmatpush.bf16.msra.mxu0 %v81
  %117 = vmatpush.bf16.msra.mxu0 %v77
  %118 = vmatmul.bf16.gmra.mxu0 %v94
  %v119 = vpop.f32.mrf.mxu0
  %v120 = vadd.f32 %v40, %v119
  %v121 = vpop.f32.mrf.mxu0
  %v122 = vadd.f32 %v40, %v121
  %123 = vdwg.mxu0
  %124 = vmatpush.bf16.msra.mxu0 0
  %125 = vmatpush.bf16.msra.mxu0 0
  %126 = vmatpush.bf16.msra.mxu0 0
  %127 = vmatpush.bf16.msra.mxu0 0
  %128 = vmatpush.bf16.msra.mxu0 0
  %129 = vmatpush.bf16.msra.mxu0 0
  %130 = vmatpush.bf16.msra.mxu0 %v82
  %131 = vmatpush.bf16.msra.mxu0 %v78
  %132 = vmatmul.bf16.gmra.mxu0 %v94
  %v133 = vpop.f32.mrf.mxu0
  %v134 = vadd.f32 %v41, %v133
  %v135 = vpop.f32.mrf.mxu0
  %v136 = vadd.f32 %v41, %v135
  %137 = vdwg.mxu0
  %138 = vmatpush.bf16.msra.mxu0 0
  %139 = vmatpush.bf16.msra.mxu0 0
  %140 = vmatpush.bf16.msra.mxu0 0
  %141 = vmatpush.bf16.msra.mxu0 0
  %142 = vmatpush.bf16.msra.mxu0 0
  %143 = vmatpush.bf16.msra.mxu0 0
  %144 = vmatpush.bf16.msra.mxu0 %v83
  %145 = vmatpush.bf16.msra.mxu0 %v79
  %146 = vmatmul.bf16.gmra.mxu0 %v94
  %v147 = vpop.f32.mrf.mxu0
  %v148 = vadd.f32 %v42, %v147
  %v149 = vpop.f32.mrf.mxu0
  %v150 = vadd.f32 %v42, %v149
  %151 = vdwg.mxu0
  %v152 = vmax.f32 %v106, 0.0
  %v153 = vmax.f32 %v120, 0.0
  %v154 = vmax.f32 %v134, 0.0
  %v155 = vmax.f32 %v148, 0.0
  %v156 = vmax.f32 %v108, 0.0
  %v157 = vmax.f32 %v122, 0.0
  %v158 = vmax.f32 %v136, 0.0
  %v159 = vmax.f32 %v150, 0.0
  %v160 = vpack.c.bf16 %v156, %v152
  %v161 = vpack.c.bf16 %v157, %v153
  %v162 = vpack.c.bf16 %v158, %v154
  %v163 = vpack.c.bf16 %v159, %v155
  %v164 = vld [vmem:[%s3] sm:$0xff]
  %v165 = vld [vmem:[%s3 + $0x8] sm:$0xff]
  %v166 = vld [vmem:[%s3 + $0x10] sm:$0xff]
  %v167 = vld [vmem:[%s3 + $0x18] sm:$0xff]
  %v168 = vld [vmem:[%s3 + $0x20] sm:$0xff]
  %v169 = vld [vmem:[%s3 + $0x28] sm:$0xff]
  %v170 = vld [vmem:[%s3 + $0x30] sm:$0xff]
  %v171 = vld [vmem:[%s3 + $0x38] sm:$0xff]
  %v172 = vld [vmem:[%s3 + $0x40] sm:$0xff]
  %v173 = vld [vmem:[%s3 + $0x48] sm:$0xff]
  %v174 = vld [vmem:[%s3 + $0x50] sm:$0xff]
  %v175 = vld [vmem:[%s3 + $0x58] sm:$0xff]
  %v176 = vld [vmem:[%s3 + $0x60] sm:$0xff]
  %v177 = vld [vmem:[%s3 + $0x68] sm:$0xff]
  %v178 = vld [vmem:[%s3 + $0x70] sm:$0xff]
  %v179 = vld [vmem:[%s3 + $0x78] sm:$0xff]
  %v180 = vld [vmem:[%s3 + $0x80] sm:$0xff]
  %v181 = vld [vmem:[%s3 + $0x88] sm:$0xff]
  %v182 = vld [vmem:[%s3 + $0x90] sm:$0xff]
  %v183 = vld [vmem:[%s3 + $0x98] sm:$0xff]
  %v184 = vld [vmem:[%s3 + $0xa0] sm:$0xff]
  %v185 = vld [vmem:[%s3 + $0xa8] sm:$0xff]
  %v186 = vld [vmem:[%s3 + $0xb0] sm:$0xff]
  %v187 = vld [vmem:[%s3 + $0xb8] sm:$0xff]
  %v188 = vld [vmem:[%s3 + $0xc0] sm:$0xff]
  %v189 = vld [vmem:[%s3 + $0xc8] sm:$0xff]
  %v190 = vld [vmem:[%s3 + $0xd0] sm:$0xff]
  %v191 = vld [vmem:[%s3 + $0xd8] sm:$0xff]
  %v192 = vld [vmem:[%s3 + $0xe0] sm:$0xff]
  %v193 = vld [vmem:[%s3 + $0xe8] sm:$0xff]
  %v194 = vld [vmem:[%s3 + $0xf0] sm:$0xff]
  %v195 = vld [vmem:[%s3 + $0xf8] sm:$0xff]
  %v196 = vld [vmem:[%s3 + $0x100] sm:$0xff]
  %v197 = vld [vmem:[%s3 + $0x108] sm:$0xff]
  %v198 = vld [vmem:[%s3 + $0x110] sm:$0xff]
  %v199 = vld [vmem:[%s3 + $0x118] sm:$0xff]
  %v200 = vld [vmem:[%s3 + $0x120] sm:$0xff]
  %v201 = vld [vmem:[%s3 + $0x128] sm:$0xff]
  %v202 = vld [vmem:[%s3 + $0x130] sm:$0xff]
  %v203 = vld [vmem:[%s3 + $0x138] sm:$0xff]
  %v204 = vld [vmem:[%s3 + $0x140] sm:$0xff]
  %v205 = vld [vmem:[%s3 + $0x148] sm:$0xff]
  %v206 = vld [vmem:[%s3 + $0x150] sm:$0xff]
  %v207 = vld [vmem:[%s3 + $0x158] sm:$0xff]
  %v208 = vld [vmem:[%s3 + $0x160] sm:$0xff]
  %v209 = vld [vmem:[%s3 + $0x168] sm:$0xff]
  %v210 = vld [vmem:[%s3 + $0x170] sm:$0xff]
  %v211 = vld [vmem:[%s3 + $0x178] sm:$0xff]
  %v212 = vld [vmem:[%s3 + $0x180] sm:$0xff]
  %v213 = vld [vmem:[%s3 + $0x188] sm:$0xff]
  %v214 = vld [vmem:[%s3 + $0x190] sm:$0xff]
  %v215 = vld [vmem:[%s3 + $0x198] sm:$0xff]
  %v216 = vld [vmem:[%s3 + $0x1a0] sm:$0xff]
  %v217 = vld [vmem:[%s3 + $0x1a8] sm:$0xff]
  %v218 = vld [vmem:[%s3 + $0x1b0] sm:$0xff]
  %v219 = vld [vmem:[%s3 + $0x1b8] sm:$0xff]
  %v220 = vld [vmem:[%s3 + $0x1c0] sm:$0xff]
  %v221 = vld [vmem:[%s3 + $0x1c8] sm:$0xff]
  %v222 = vld [vmem:[%s3 + $0x1d0] sm:$0xff]
  %v223 = vld [vmem:[%s3 + $0x1d8] sm:$0xff]
  %v224 = vld [vmem:[%s3 + $0x1e0] sm:$0xff]
  %v225 = vld [vmem:[%s3 + $0x1e8] sm:$0xff]
  %v226 = vld [vmem:[%s3 + $0x1f0] sm:$0xff]
  %v227 = vld [vmem:[%s3 + $0x1f8] sm:$0xff]
  %v228 = vld [vmem:[%s4] sm:$0x3]
  %v230 = vperm.slane %v228, 0
  %v231 = vperm.slane %v228, 1
  %v298 = vunpack.c.l.b16 %v164
  %v299 = vunpack.c.h.b16 %v164
  %v300 = vunpack.c.l.b16 %v165
  %v301 = vunpack.c.h.b16 %v165
  %v302 = vunpack.c.l.b16 %v166
  %v303 = vunpack.c.h.b16 %v166
  %v304 = vunpack.c.l.b16 %v167
  %v305 = vunpack.c.h.b16 %v167
  %v306 = vunpack.c.l.b16 %v168
  %v307 = vunpack.c.h.b16 %v168
  %v308 = vunpack.c.l.b16 %v169
  %v309 = vunpack.c.h.b16 %v169
  %v310 = vunpack.c.l.b16 %v170
  %v311 = vunpack.c.h.b16 %v170
  %v312 = vunpack.c.l.b16 %v171
  %v313 = vunpack.c.h.b16 %v171
  %v314 = vunpack.c.l.b16 %v172
  %v315 = vunpack.c.h.b16 %v172
  %v316 = vunpack.c.l.b16 %v173
  %v317 = vunpack.c.h.b16 %v173
  %v318 = vunpack.c.l.b16 %v174
  %v319 = vunpack.c.h.b16 %v174
  %v320 = vunpack.c.l.b16 %v175
  %v321 = vunpack.c.h.b16 %v175
  %v322 = vunpack.c.l.b16 %v176
  %v323 = vunpack.c.h.b16 %v176
  %v324 = vunpack.c.l.b16 %v177
  %v325 = vunpack.c.h.b16 %v177
  %v326 = vunpack.c.l.b16 %v178
  %v327 = vunpack.c.h.b16 %v178
  %v328 = vunpack.c.l.b16 %v179
  %v329 = vunpack.c.h.b16 %v179
  %v330 = vunpack.c.l.b16 %v180
  %v331 = vunpack.c.h.b16 %v180
  %v332 = vunpack.c.l.b16 %v181
  %v333 = vunpack.c.h.b16 %v181
  %v334 = vunpack.c.l.b16 %v182
  %v335 = vunpack.c.h.b16 %v182
  %v336 = vunpack.c.l.b16 %v183
  %v337 = vunpack.c.h.b16 %v183
  %v338 = vunpack.c.l.b16 %v184
  %v339 = vunpack.c.h.b16 %v184
  %v340 = vunpack.c.l.b16 %v185
  %v341 = vunpack.c.h.b16 %v185
  %v342 = vunpack.c.l.b16 %v186
  %v343 = vunpack.c.h.b16 %v186
  %v344 = vunpack.c.l.b16 %v187
  %v345 = vunpack.c.h.b16 %v187
  %v346 = vunpack.c.l.b16 %v188
  %v347 = vunpack.c.h.b16 %v188
  %v348 = vunpack.c.l.b16 %v189
  %v349 = vunpack.c.h.b16 %v189
  %v350 = vunpack.c.l.b16 %v190
  %v351 = vunpack.c.h.b16 %v190
  %v352 = vunpack.c.l.b16 %v191
  %v353 = vunpack.c.h.b16 %v191
  %v354 = vunpack.c.l.b16 %v192
  %v355 = vunpack.c.h.b16 %v192
  %v356 = vunpack.c.l.b16 %v193
  %v357 = vunpack.c.h.b16 %v193
  %v358 = vunpack.c.l.b16 %v194
  %v359 = vunpack.c.h.b16 %v194
  %v360 = vunpack.c.l.b16 %v195
  %v361 = vunpack.c.h.b16 %v195
  %v362 = vunpack.c.l.b16 %v196
  %v363 = vunpack.c.h.b16 %v196
  %v364 = vunpack.c.l.b16 %v197
  %v365 = vunpack.c.h.b16 %v197
  %v366 = vunpack.c.l.b16 %v198
  %v367 = vunpack.c.h.b16 %v198
  %v368 = vunpack.c.l.b16 %v199
  %v369 = vunpack.c.h.b16 %v199
  %v370 = vunpack.c.l.b16 %v200
  %v371 = vunpack.c.h.b16 %v200
  %v372 = vunpack.c.l.b16 %v201
  %v373 = vunpack.c.h.b16 %v201
  %v374 = vunpack.c.l.b16 %v202
  %v375 = vunpack.c.h.b16 %v202
  %v376 = vunpack.c.l.b16 %v203
  %v377 = vunpack.c.h.b16 %v203
  %v378 = vunpack.c.l.b16 %v204
  %v379 = vunpack.c.h.b16 %v204
  %v380 = vunpack.c.l.b16 %v205
  %v381 = vunpack.c.h.b16 %v205
  %v382 = vunpack.c.l.b16 %v206
  %v383 = vunpack.c.h.b16 %v206
  %v384 = vunpack.c.l.b16 %v207
  %v385 = vunpack.c.h.b16 %v207
  %v386 = vunpack.c.l.b16 %v208
  %v387 = vunpack.c.h.b16 %v208
  %v388 = vunpack.c.l.b16 %v209
  %v389 = vunpack.c.h.b16 %v209
  %v390 = vunpack.c.l.b16 %v210
  %v391 = vunpack.c.h.b16 %v210
  %v392 = vunpack.c.l.b16 %v211
  %v393 = vunpack.c.h.b16 %v211
  %v394 = vunpack.c.l.b16 %v212
  %v395 = vunpack.c.h.b16 %v212
  %v396 = vunpack.c.l.b16 %v213
  %v397 = vunpack.c.h.b16 %v213
  %v398 = vunpack.c.l.b16 %v214
  %v399 = vunpack.c.h.b16 %v214
  %v400 = vunpack.c.l.b16 %v215
  %v401 = vunpack.c.h.b16 %v215
  %v402 = vunpack.c.l.b16 %v216
  %v403 = vunpack.c.h.b16 %v216
  %v404 = vunpack.c.l.b16 %v217
  %v405 = vunpack.c.h.b16 %v217
  %v406 = vunpack.c.l.b16 %v218
  %v407 = vunpack.c.h.b16 %v218
  %v408 = vunpack.c.l.b16 %v219
  %v409 = vunpack.c.h.b16 %v219
  %v410 = vunpack.c.l.b16 %v220
  %v411 = vunpack.c.h.b16 %v220
  %v412 = vunpack.c.l.b16 %v221
  %v413 = vunpack.c.h.b16 %v221
  %v414 = vunpack.c.l.b16 %v222
  %v415 = vunpack.c.h.b16 %v222
  %v416 = vunpack.c.l.b16 %v223
  %v417 = vunpack.c.h.b16 %v223
  %v418 = vunpack.c.l.b16 %v224
  %v419 = vunpack.c.h.b16 %v224
  %v420 = vunpack.c.l.b16 %v225
  %v421 = vunpack.c.h.b16 %v225
  %v422 = vunpack.c.l.b16 %v226
  %v423 = vunpack.c.h.b16 %v226
  %v424 = vunpack.c.l.b16 %v227
  %v425 = vunpack.c.h.b16 %v227
  %v426 = vpack.c.b16 %v300, %v298
  %v427 = vpack.c.b16 %v301, %v299
  %v428 = vpack.c.b16 %v304, %v302
  %v429 = vpack.c.b16 %v305, %v303
  %v430 = vpack.c.b16 %v308, %v306
  %v431 = vpack.c.b16 %v309, %v307
  %v432 = vpack.c.b16 %v312, %v310
  %v433 = vpack.c.b16 %v313, %v311
  %v434 = vpack.c.b16 %v316, %v314
  %v435 = vpack.c.b16 %v317, %v315
  %v436 = vpack.c.b16 %v320, %v318
  %v437 = vpack.c.b16 %v321, %v319
  %v438 = vpack.c.b16 %v324, %v322
  %v439 = vpack.c.b16 %v325, %v323
  %v440 = vpack.c.b16 %v328, %v326
  %v441 = vpack.c.b16 %v329, %v327
  %v442 = vpack.c.b16 %v332, %v330
  %v443 = vpack.c.b16 %v333, %v331
  %v444 = vpack.c.b16 %v336, %v334
  %v445 = vpack.c.b16 %v337, %v335
  %v446 = vpack.c.b16 %v340, %v338
  %v447 = vpack.c.b16 %v341, %v339
  %v448 = vpack.c.b16 %v344, %v342
  %v449 = vpack.c.b16 %v345, %v343
  %v450 = vpack.c.b16 %v348, %v346
  %v451 = vpack.c.b16 %v349, %v347
  %v452 = vpack.c.b16 %v352, %v350
  %v453 = vpack.c.b16 %v353, %v351
  %v454 = vpack.c.b16 %v356, %v354
  %v455 = vpack.c.b16 %v357, %v355
  %v456 = vpack.c.b16 %v360, %v358
  %v457 = vpack.c.b16 %v361, %v359
  %v458 = vpack.c.b16 %v364, %v362
  %v459 = vpack.c.b16 %v365, %v363
  %v460 = vpack.c.b16 %v368, %v366
  %v461 = vpack.c.b16 %v369, %v367
  %v462 = vpack.c.b16 %v372, %v370
  %v463 = vpack.c.b16 %v373, %v371
  %v464 = vpack.c.b16 %v376, %v374
  %v465 = vpack.c.b16 %v377, %v375
  %v466 = vpack.c.b16 %v380, %v378
  %v467 = vpack.c.b16 %v381, %v379
  %v468 = vpack.c.b16 %v384, %v382
  %v469 = vpack.c.b16 %v385, %v383
  %v470 = vpack.c.b16 %v388, %v386
  %v471 = vpack.c.b16 %v389, %v387
  %v472 = vpack.c.b16 %v392, %v390
  %v473 = vpack.c.b16 %v393, %v391
  %v474 = vpack.c.b16 %v396, %v394
  %v475 = vpack.c.b16 %v397, %v395
  %v476 = vpack.c.b16 %v400, %v398
  %v477 = vpack.c.b16 %v401, %v399
  %v478 = vpack.c.b16 %v404, %v402
  %v479 = vpack.c.b16 %v405, %v403
  %v480 = vpack.c.b16 %v408, %v406
  %v481 = vpack.c.b16 %v409, %v407
  %v482 = vpack.c.b16 %v412, %v410
  %v483 = vpack.c.b16 %v413, %v411
  %v484 = vpack.c.b16 %v416, %v414
  %v485 = vpack.c.b16 %v417, %v415
  %v486 = vpack.c.b16 %v420, %v418
  %v487 = vpack.c.b16 %v421, %v419
  %v488 = vpack.c.b16 %v424, %v422
  %v489 = vpack.c.b16 %v425, %v423
  %554 = vmatpush.bf16.msra.mxu0 %v440
  %555 = vmatpush.bf16.msra.mxu0 %v438
  %556 = vmatpush.bf16.msra.mxu0 %v436
  %557 = vmatpush.bf16.msra.mxu0 %v434
  %558 = vmatpush.bf16.msra.mxu0 %v432
  %559 = vmatpush.bf16.msra.mxu0 %v430
  %560 = vmatpush.bf16.msra.mxu0 %v428
  %561 = vmatpush.bf16.msra.mxu0 %v426
  %562 = vmatmul.bf16.gmra.mxu0 %v160
  %v563 = vpop.f32.mrf.mxu0
  %v564 = vadd.f32 %v230, %v563
  %v565 = vpop.f32.mrf.mxu0
  %v566 = vadd.f32 %v230, %v565
  %567 = vdwg.mxu0
  %568 = vmatpush.bf16.msra.mxu0 %v456
  %569 = vmatpush.bf16.msra.mxu0 %v454
  %570 = vmatpush.bf16.msra.mxu0 %v452
  %571 = vmatpush.bf16.msra.mxu0 %v450
  %572 = vmatpush.bf16.msra.mxu0 %v448
  %573 = vmatpush.bf16.msra.mxu0 %v446
  %574 = vmatpush.bf16.msra.mxu0 %v444
  %575 = vmatpush.bf16.msra.mxu0 %v442
  %576 = vmatmul.bf16.gmra.mxu0 %v161
  %v577 = vpop.f32.mrf.mxu0
  %v578 = vadd.f32 %v564, %v577
  %v579 = vpop.f32.mrf.mxu0
  %v580 = vadd.f32 %v566, %v579
  %581 = vdwg.mxu0
  %582 = vmatpush.bf16.msra.mxu0 %v472
  %583 = vmatpush.bf16.msra.mxu0 %v470
  %584 = vmatpush.bf16.msra.mxu0 %v468
  %585 = vmatpush.bf16.msra.mxu0 %v466
  %586 = vmatpush.bf16.msra.mxu0 %v464
  %587 = vmatpush.bf16.msra.mxu0 %v462
  %588 = vmatpush.bf16.msra.mxu0 %v460
  %589 = vmatpush.bf16.msra.mxu0 %v458
  %590 = vmatmul.bf16.gmra.mxu0 %v162
  %v591 = vpop.f32.mrf.mxu0
  %v592 = vadd.f32 %v578, %v591
  %v593 = vpop.f32.mrf.mxu0
  %v594 = vadd.f32 %v580, %v593
  %595 = vdwg.mxu0
  %596 = vmatpush.bf16.msra.mxu0 %v488
  %597 = vmatpush.bf16.msra.mxu0 %v486
  %598 = vmatpush.bf16.msra.mxu0 %v484
  %599 = vmatpush.bf16.msra.mxu0 %v482
  %600 = vmatpush.bf16.msra.mxu0 %v480
  %601 = vmatpush.bf16.msra.mxu0 %v478
  %602 = vmatpush.bf16.msra.mxu0 %v476
  %603 = vmatpush.bf16.msra.mxu0 %v474
  %604 = vmatmul.bf16.gmra.mxu0 %v163
  %v605 = vpop.f32.mrf.mxu0
  %v606 = vadd.f32 %v592, %v605
  %v607 = vpop.f32.mrf.mxu0
  %v608 = vadd.f32 %v594, %v607
  %609 = vdwg.mxu0
  %610 = vmatpush.bf16.msra.mxu0 %v441
  %611 = vmatpush.bf16.msra.mxu0 %v439
  %612 = vmatpush.bf16.msra.mxu0 %v437
  %613 = vmatpush.bf16.msra.mxu0 %v435
  %614 = vmatpush.bf16.msra.mxu0 %v433
  %615 = vmatpush.bf16.msra.mxu0 %v431
  %616 = vmatpush.bf16.msra.mxu0 %v429
  %617 = vmatpush.bf16.msra.mxu0 %v427
  %618 = vmatmul.bf16.gmra.mxu0 %v160
  %v619 = vpop.f32.mrf.mxu0
  %v620 = vadd.f32 %v231, %v619
  %v621 = vpop.f32.mrf.mxu0
  %v622 = vadd.f32 %v231, %v621
  %623 = vdwg.mxu0
  %624 = vmatpush.bf16.msra.mxu0 %v457
  %625 = vmatpush.bf16.msra.mxu0 %v455
  %626 = vmatpush.bf16.msra.mxu0 %v453
  %627 = vmatpush.bf16.msra.mxu0 %v451
  %628 = vmatpush.bf16.msra.mxu0 %v449
  %629 = vmatpush.bf16.msra.mxu0 %v447
  %630 = vmatpush.bf16.msra.mxu0 %v445
  %631 = vmatpush.bf16.msra.mxu0 %v443
  %632 = vmatmul.bf16.gmra.mxu0 %v161
  %v633 = vpop.f32.mrf.mxu0
  %v634 = vadd.f32 %v620, %v633
  %v635 = vpop.f32.mrf.mxu0
  %v636 = vadd.f32 %v622, %v635
  %637 = vdwg.mxu0
  %638 = vmatpush.bf16.msra.mxu0 %v473
  %639 = vmatpush.bf16.msra.mxu0 %v471
  %640 = vmatpush.bf16.msra.mxu0 %v469
  %641 = vmatpush.bf16.msra.mxu0 %v467
  %642 = vmatpush.bf16.msra.mxu0 %v465
  %643 = vmatpush.bf16.msra.mxu0 %v463
  %644 = vmatpush.bf16.msra.mxu0 %v461
  %645 = vmatpush.bf16.msra.mxu0 %v459
  %646 = vmatmul.bf16.gmra.mxu0 %v162
  %v647 = vpop.f32.mrf.mxu0
  %v648 = vadd.f32 %v634, %v647
  %v649 = vpop.f32.mrf.mxu0
  %v650 = vadd.f32 %v636, %v649
  %651 = vdwg.mxu0
  %652 = vmatpush.bf16.msra.mxu0 %v489
  %653 = vmatpush.bf16.msra.mxu0 %v487
  %654 = vmatpush.bf16.msra.mxu0 %v485
  %655 = vmatpush.bf16.msra.mxu0 %v483
  %656 = vmatpush.bf16.msra.mxu0 %v481
  %657 = vmatpush.bf16.msra.mxu0 %v479
  %658 = vmatpush.bf16.msra.mxu0 %v477
  %659 = vmatpush.bf16.msra.mxu0 %v475
  %660 = vmatmul.bf16.gmra.mxu0 %v163
  %v661 = vpop.f32.mrf.mxu0
  %v662 = vadd.f32 %v648, %v661
  %v663 = vpop.f32.mrf.mxu0
  %v664 = vadd.f32 %v650, %v663
  %665 = vdwg.mxu0
  %v666 = vmax.f32 %v606, 0.0
  %v667 = vmax.f32 %v662, 0.0
  %v668 = vmax.f32 %v608, 0.0
  %v669 = vmax.f32 %v664, 0.0
  %v670 = vpack.c.bf16 %v668, %v666
  %v671 = vpack.c.bf16 %v669, %v667
  %v672 = vld [vmem:[%s5] sm:$0xf]
  %v673 = vld [vmem:[%s5 + $0x4] sm:$0xf]
  %v674 = vld [vmem:[%s5 + $0x8] sm:$0xf]
  %v675 = vld [vmem:[%s5 + $0xc] sm:$0xf]
  %v676 = vld [vmem:[%s5 + $0x10] sm:$0xf]
  %v677 = vld [vmem:[%s5 + $0x14] sm:$0xf]
  %v678 = vld [vmem:[%s5 + $0x18] sm:$0xf]
  %v679 = vld [vmem:[%s5 + $0x1c] sm:$0xf]
  %v680 = vld [vmem:[%s5 + $0x20] sm:$0xf]
  %v681 = vld [vmem:[%s5 + $0x24] sm:$0xf]
  %v682 = vld [vmem:[%s5 + $0x28] sm:$0xf]
  %v683 = vld [vmem:[%s5 + $0x2c] sm:$0xf]
  %v684 = vld [vmem:[%s5 + $0x30] sm:$0xf]
  %v685 = vld [vmem:[%s5 + $0x34] sm:$0xf]
  %v686 = vld [vmem:[%s5 + $0x38] sm:$0xf]
  %v687 = vld [vmem:[%s5 + $0x3c] sm:$0xf]
  %v688 = vld [vmem:[%s5 + $0x40] sm:$0xf]
  %v689 = vld [vmem:[%s5 + $0x44] sm:$0xf]
  %v690 = vld [vmem:[%s5 + $0x48] sm:$0xf]
  %v691 = vld [vmem:[%s5 + $0x4c] sm:$0xf]
  %v692 = vld [vmem:[%s5 + $0x50] sm:$0xf]
  %v693 = vld [vmem:[%s5 + $0x54] sm:$0xf]
  %v694 = vld [vmem:[%s5 + $0x58] sm:$0xf]
  %v695 = vld [vmem:[%s5 + $0x5c] sm:$0xf]
  %v696 = vld [vmem:[%s5 + $0x60] sm:$0xf]
  %v697 = vld [vmem:[%s5 + $0x64] sm:$0xf]
  %v698 = vld [vmem:[%s5 + $0x68] sm:$0xf]
  %v699 = vld [vmem:[%s5 + $0x6c] sm:$0xf]
  %v700 = vld [vmem:[%s5 + $0x70] sm:$0xf]
  %v701 = vld [vmem:[%s5 + $0x74] sm:$0xf]
  %v702 = vld [vmem:[%s5 + $0x78] sm:$0xf]
  %v703 = vld [vmem:[%s5 + $0x7c] sm:$0xf]
  %v704 = vld [vmem:[%s6] sm:$0x1]
  %v706 = vperm.slane %v704, 0
  %v740 = vunpack.c.l.b16 %v672
  %v741 = vunpack.c.l.b16 %v673
  %v742 = vunpack.c.l.b16 %v674
  %v743 = vunpack.c.l.b16 %v675
  %v744 = vunpack.c.l.b16 %v676
  %v745 = vunpack.c.l.b16 %v677
  %v746 = vunpack.c.l.b16 %v678
  %v747 = vunpack.c.l.b16 %v679
  %v748 = vunpack.c.l.b16 %v680
  %v749 = vunpack.c.l.b16 %v681
  %v750 = vunpack.c.l.b16 %v682
  %v751 = vunpack.c.l.b16 %v683
  %v752 = vunpack.c.l.b16 %v684
  %v753 = vunpack.c.l.b16 %v685
  %v754 = vunpack.c.l.b16 %v686
  %v755 = vunpack.c.l.b16 %v687
  %v756 = vunpack.c.l.b16 %v688
  %v757 = vunpack.c.l.b16 %v689
  %v758 = vunpack.c.l.b16 %v690
  %v759 = vunpack.c.l.b16 %v691
  %v760 = vunpack.c.l.b16 %v692
  %v761 = vunpack.c.l.b16 %v693
  %v762 = vunpack.c.l.b16 %v694
  %v763 = vunpack.c.l.b16 %v695
  %v764 = vunpack.c.l.b16 %v696
  %v765 = vunpack.c.l.b16 %v697
  %v766 = vunpack.c.l.b16 %v698
  %v767 = vunpack.c.l.b16 %v699
  %v768 = vunpack.c.l.b16 %v700
  %v769 = vunpack.c.l.b16 %v701
  %v770 = vunpack.c.l.b16 %v702
  %v771 = vunpack.c.l.b16 %v703
  %v772 = vpack.c.b16 %v741, %v740
  %v773 = vpack.c.b16 %v743, %v742
  %v774 = vpack.c.b16 %v745, %v744
  %v775 = vpack.c.b16 %v747, %v746
  %v776 = vpack.c.b16 %v749, %v748
  %v777 = vpack.c.b16 %v751, %v750
  %v778 = vpack.c.b16 %v753, %v752
  %v779 = vpack.c.b16 %v755, %v754
  %v780 = vpack.c.b16 %v757, %v756
  %v781 = vpack.c.b16 %v759, %v758
  %v782 = vpack.c.b16 %v761, %v760
  %v783 = vpack.c.b16 %v763, %v762
  %v784 = vpack.c.b16 %v765, %v764
  %v785 = vpack.c.b16 %v767, %v766
  %v786 = vpack.c.b16 %v769, %v768
  %v787 = vpack.c.b16 %v771, %v770
  %804 = vmatpush.bf16.msra.mxu0 %v779
  %805 = vmatpush.bf16.msra.mxu0 %v778
  %806 = vmatpush.bf16.msra.mxu0 %v777
  %807 = vmatpush.bf16.msra.mxu0 %v776
  %808 = vmatpush.bf16.msra.mxu0 %v775
  %809 = vmatpush.bf16.msra.mxu0 %v774
  %810 = vmatpush.bf16.msra.mxu0 %v773
  %811 = vmatpush.bf16.msra.mxu0 %v772
  %812 = vmatmul.bf16.gmra.mxu0 %v670
  %v813 = vpop.f32.mrf.mxu0
  %v814 = vadd.f32 %v706, %v813
  %v815 = vpop.f32.mrf.mxu0
  %v816 = vadd.f32 %v706, %v815
  %817 = vdwg.mxu0
  %818 = vmatpush.bf16.msra.mxu0 %v787
  %819 = vmatpush.bf16.msra.mxu0 %v786
  %820 = vmatpush.bf16.msra.mxu0 %v785
  %821 = vmatpush.bf16.msra.mxu0 %v784
  %822 = vmatpush.bf16.msra.mxu0 %v783
  %823 = vmatpush.bf16.msra.mxu0 %v782
  %824 = vmatpush.bf16.msra.mxu0 %v781
  %825 = vmatpush.bf16.msra.mxu0 %v780
  %826 = vmatmul.bf16.gmra.mxu0 %v671
  %v827 = vpop.f32.mrf.mxu0
  %v828 = vadd.f32 %v814, %v827
  %v829 = vpop.f32.mrf.mxu0
  %v830 = vadd.f32 %v816, %v829
  %831 = vdwg.mxu0
  %832 = vst [vmem:[%s7] sm:$0xff] %v828
  %833 = vst [vmem:[%s7 + $0x8] sm:$0xff] %v830
  // Predicated region
  $region30: #{mlp_forward.1} parent=0 // pred_check
    _
  $region31: #{mlp_forward.1} parent=0 // pred_check_branch
    %835 = sbr.rel (0) target = $region33
  $region32: #{mlp_forward.1} parent=0 // pred_region
    _
  $region33: #{mlp_forward.1} parent=0 // pred_fallthru
    _
  // Predicated region
  $region34: #{mlp_forward.1} parent=0 // pred_check
    _
  $region35: #{mlp_forward.1} parent=0 // pred_check_branch
    %837 = sbr.rel (0) target = $region37
  $region36: #{mlp_forward.1} parent=0 // pred_region
    _
  $region37: #{mlp_forward.1} parent=0 // pred_fallthru
    _

</llo_original>
